<compile_context>
chip_gen: v6e
topology: v6e:2x2x1
jax: 0.10.0
libtpu: 0.0.40
codegen_flags: <defaults>
</compile_context>

<pallas_src>
import jax
import jax.numpy as jnp
import numpy as np
from jax.experimental import pallas as pl
from jax.experimental.pallas import tpu as pltpu


def _round_up(x, m):
    return (x + m - 1) // m * m


def features_linear(x_idx, offsets, table, bias, *, tb=256):
    """out[b] = sum_f table[x_idx[b, f] + offsets[f]] + bias   -> (B, D) float32."""
    B, F = x_idx.shape
    V, D = table.shape

    # Fold per-field offsets into the indices once and clamp defensively.
    idx = jnp.clip(
        x_idx.astype(jnp.int32) + offsets.reshape(1, F).astype(jnp.int32), 0, V - 1
    )

    # Batch tile: multiple of 8 sublanes; pad batch so it divides evenly.
    tb = min(_round_up(tb, 8), _round_up(B, 8))
    b_pad = _round_up(B, tb)
    if b_pad != B:
        # index 0 is a valid row; the padded output rows are sliced off below.
        idx = jnp.pad(idx, ((0, b_pad - B), (0, 0)))
    idx_flat = idx.reshape(b_pad * F)

    table_f32 = table.astype(jnp.float32)
    bias_row = bias.reshape(1, D).astype(jnp.float32)

    def kernel(idx_sm, table_ref, bias_ref, out_ref):
        # idx_sm:    (b_pad * F,) int32 in SMEM (scalar-prefetched, offsets folded)
        # table_ref: (V, D) f32 in VMEM, pinned across the batch grid
        # bias_ref:  (1, D) f32 in VMEM, pinned
        # out_ref:   (tb, D) f32 output tile for this batch block
        base = pl.program_id(0) * (tb * F)
        bias_v = bias_ref[...]  # (1, D), hoisted out of the row loop

        @pl.loop(0, tb)
        def _(b):
            acc = bias_v
            for f in range(F):                          # F is small & static -> unrolled
                i = idx_sm[base + b * F + f]            # scalar index from SMEM
                acc = acc + table_ref[pl.ds(i, 1), :]   # dynamic (1, D) row gather
            out_ref[pl.ds(b, 1), :] = acc

    grid_spec = pltpu.PrefetchScalarGridSpec(
        num_scalar_prefetch=1,
        grid=(b_pad // tb,),
        in_specs=[
            pl.BlockSpec((V, D), lambda i, idx_ref: (0, 0)),   # whole table, pinned
            pl.BlockSpec((1, D), lambda i, idx_ref: (0, 0)),   # bias, pinned
        ],
        out_specs=pl.BlockSpec((tb, D), lambda i, idx_ref: (i, 0)),
    )

    out = pl.pallas_call(
        kernel,
        grid_spec=grid_spec,
        out_shape=jax.ShapeDtypeStruct((b_pad, D), jnp.float32),
        compiler_params=pltpu.CompilerParams(dimension_semantics=("parallel",)),
    )(idx_flat, table_f32, bias_row)

    return out[:B]


if __name__ == "__main__":
    # Small synthetic config mirroring FeaturesLinear(field_dims, output_dim=1).
    field_dims = [3, 5, 7, 9]          # num_fields = 4, vocab = 24
    output_dim = 1
    batch = 20                         # exercises padding + a multi-step batch grid
    num_fields = len(field_dims)
    vocab = int(np.sum(field_dims))

    key = jax.random.PRNGKey(0)
    k_tab, k_idx = jax.random.split(key)

    # Deterministic parameter init; bias starts at zero (as in the module).
    table = jax.random.normal(k_tab, (vocab, output_dim), dtype=jnp.float32) * 0.1
    bias = jnp.zeros((output_dim,), dtype=jnp.float32)

    # offsets = (0, cumsum(field_dims)[:-1])
    offsets = jnp.asarray(np.array((0, *np.cumsum(field_dims)[:-1]), dtype=np.int32))

    # Per-field indices in [0, field_dims[f])
    uni = jax.random.uniform(k_idx, (batch, num_fields))
    x_idx = jnp.floor(uni * jnp.asarray(field_dims, dtype=jnp.float32)).astype(jnp.int32)

    out = features_linear(x_idx, offsets, table, bias, tb=8)
    out = jax.block_until_ready(out)

    # Pure-JAX reference (gather + field-sum + bias).
    ref = jnp.sum(table[x_idx + offsets[None, :]], axis=1) + bias[None, :]
    assert out.shape == (batch, output_dim)
    np.testing.assert_allclose(np.asarray(out), np.asarray(ref), rtol=1e-5, atol=1e-6)

    print("KERNEL_OK")
</pallas_src>

<mosaic_0001>
module attributes {stable_mosaic.version = 11 : i64} {
  func.func @kernel(%arg0: i32, %arg1: memref<96xi32, #tpu.memory_space<smem>>, %arg2: memref<24x1xf32, #tpu.memory_space<vmem>>, %arg3: memref<1x1xf32, #tpu.memory_space<vmem>>, %arg4: memref<8x1xf32, #tpu.memory_space<vmem>>) attributes {dimension_semantics = [#tpu.dimension_semantics<parallel>], iteration_bounds = array<i64: 3>, scalar_prefetch = 1 : i64, scratch_operands = 0 : i64, tpu.core_type = #tpu.core_type<tc>, window_params = [{pipeline_mode = #tpu.pipeline_mode<synchronous>, transform_indices = @transform_0, window_bounds = array<i64: 24, 1>}, {pipeline_mode = #tpu.pipeline_mode<synchronous>, transform_indices = @transform_1, window_bounds = array<i64: 1, 1>}, {transform_indices = @transform_2, window_bounds = array<i64: 8, 1>}]} {
    %c32_i32 = arith.constant 32 : i32
    %0 = arith.muli %arg0, %c32_i32 : i32
    %c0 = arith.constant 0 : index
    %c0_0 = arith.constant 0 : index
    %1 = vector.load %arg3[%c0, %c0_0] : memref<1x1xf32, #tpu.memory_space<vmem>>, vector<1x1xf32>
    %c0_i32 = arith.constant 0 : i32
    %c8_i32 = arith.constant 8 : i32
    %2 = arith.addi %c0_i32, %c8_i32 : i32
    %c1_i32 = arith.constant 1 : i32
    scf.for %arg5 = %c0_i32 to %2 step %c1_i32  : i32 {
      %c1_i32_2 = arith.constant 1 : i32
      %3 = arith.muli %arg5, %c1_i32_2 : i32
      %c0_i32_3 = arith.constant 0 : i32
      %4 = arith.addi %c0_i32_3, %3 : i32
      %c4_i32 = arith.constant 4 : i32
      %5 = arith.muli %4, %c4_i32 : i32
      %6 = arith.addi %0, %5 : i32
      %c0_i32_4 = arith.constant 0 : i32
      %7 = arith.addi %6, %c0_i32_4 : i32
      %8 = arith.index_cast %7 : i32 to index
      %9 = memref.load %arg1[%8] : memref<96xi32, #tpu.memory_space<smem>>
      %10 = arith.index_cast %9 : i32 to index
      %c0_5 = arith.constant 0 : index
      %11 = vector.load %arg2[%10, %c0_5] : memref<24x1xf32, #tpu.memory_space<vmem>>, vector<1x1xf32>
      %12 = arith.addf %1, %11 : vector<1x1xf32>
      %c4_i32_6 = arith.constant 4 : i32
      %13 = arith.muli %4, %c4_i32_6 : i32
      %14 = arith.addi %0, %13 : i32
      %c1_i32_7 = arith.constant 1 : i32
      %15 = arith.addi %14, %c1_i32_7 : i32
      %16 = arith.index_cast %15 : i32 to index
      %17 = memref.load %arg1[%16] : memref<96xi32, #tpu.memory_space<smem>>
      %18 = arith.index_cast %17 : i32 to index
      %c0_8 = arith.constant 0 : index
      %19 = vector.load %arg2[%18, %c0_8] : memref<24x1xf32, #tpu.memory_space<vmem>>, vector<1x1xf32>
      %20 = arith.addf %12, %19 : vector<1x1xf32>
      %c4_i32_9 = arith.constant 4 : i32
      %21 = arith.muli %4, %c4_i32_9 : i32
      %22 = arith.addi %0, %21 : i32
      %c2_i32 = arith.constant 2 : i32
      %23 = arith.addi %22, %c2_i32 : i32
      %24 = arith.index_cast %23 : i32 to index
      %25 = memref.load %arg1[%24] : memref<96xi32, #tpu.memory_space<smem>>
      %26 = arith.index_cast %25 : i32 to index
      %c0_10 = arith.constant 0 : index
      %27 = vector.load %arg2[%26, %c0_10] : memref<24x1xf32, #tpu.memory_space<vmem>>, vector<1x1xf32>
      %28 = arith.addf %20, %27 : vector<1x1xf32>
      %c4_i32_11 = arith.constant 4 : i32
      %29 = arith.muli %4, %c4_i32_11 : i32
      %30 = arith.addi %0, %29 : i32
      %c3_i32 = arith.constant 3 : i32
      %31 = arith.addi %30, %c3_i32 : i32
      %32 = arith.index_cast %31 : i32 to index
      %33 = memref.load %arg1[%32] : memref<96xi32, #tpu.memory_space<smem>>
      %34 = arith.index_cast %33 : i32 to index
      %c0_12 = arith.constant 0 : index
      %35 = vector.load %arg2[%34, %c0_12] : memref<24x1xf32, #tpu.memory_space<vmem>>, vector<1x1xf32>
      %36 = arith.addf %28, %35 : vector<1x1xf32>
      %37 = arith.index_cast %4 : i32 to index
      %c0_13 = arith.constant 0 : index
      %38 = vector.load %arg4[%37, %c0_13] : memref<8x1xf32, #tpu.memory_space<vmem>>, vector<1x1xf32>
      tpu.vector_store %arg4[%37, %c0_13], %36 {strides = array<i32>} : memref<8x1xf32, #tpu.memory_space<vmem>>, vector<1x1xf32>,
    }
    %c8_i32_1 = arith.constant 8 : i32
    return
  }
  func.func @transform_0(%arg0: i32, %arg1: memref<96xi32, #tpu.memory_space<smem>>) -> (i32, i32) {
    %c0_i32 = arith.constant 0 : i32
    %c0_i32_0 = arith.constant 0 : i32
    %c0_i32_1 = arith.constant 0 : i32
    return %c0_i32, %c0_i32_0 : i32, i32
  }
  func.func @transform_1(%arg0: i32, %arg1: memref<96xi32, #tpu.memory_space<smem>>) -> (i32, i32) {
    %c0_i32 = arith.constant 0 : i32
    %c0_i32_0 = arith.constant 0 : i32
    %c0_i32_1 = arith.constant 0 : i32
    return %c0_i32, %c0_i32_0 : i32, i32
  }
  func.func @transform_2(%arg0: i32, %arg1: memref<96xi32, #tpu.memory_space<smem>>) -> (i32, i32) {
    %c0_i32 = arith.constant 0 : i32
    %c0_i32_0 = arith.constant 0 : i32
    return %arg0, %c0_i32 : i32, i32
  }
}

</mosaic_0001>

<llo_original>
// kernel: tpu_custom_call.1
$region0: #{tpu_custom_call.1}
  #allocation0 [shape = 'u32[]', space=smem, size = 0x4, offset = 0x4, fixed_abs, tag = 'smem constant byte address 0x4 - core index']
  #allocation1 [shape = 'u32[144,128]{1,0:T(1,128)}', space=vmem, size = 0x12000, scoped, tag = 'internal scratch']
  #allocation2 [shape = 's32[1]{0}', space=sflag, size = 0x4, scoped, tag = 'scoped memory for tpu_custom_call.1']
  #allocation3 [shape = 'u8[512]{0}', space=smem, size = 0x200, scoped, tag = 'prefetched SMEM operand 0']
  #allocation4 [shape = 'f32[1,1]{1,0:T(1,128)S(1)}', space=vmem, size = 0x200, scoped, tag = 'scoped memory for tpu_custom_call.1']
  %s0 = inlined_call_operand.vmem [shape: s32[96], index: 0, kind: input, shape index: {}]
  %s1 = inlined_call_operand.vmem [shape: f32[24,1], index: 1, kind: input, shape index: {}]
  %s2 = inlined_call_operand.<no memory space> [shape: f32[1,1], index: 2, kind: input, shape index: {}]
  %s3 = inlined_call_operand.vmem [shape: f32[24,1], index: 3, kind: output, shape index: {}]
  %s4 = sld [smem:[#allocation0]]
  $region48: #{tpu_custom_call.1} parent=0
    _
  %s6 = ssub.s32 1, %s4
  %s7 = scalar_select 0, %s6, %s4
  %s8 = sshll.u32 %s0, 4
  %s9 = int_to_ptr.vmem [resolvable:$true] %s8
  %11 = dma.vmem_to_smem %s9, 16, [#allocation3], [#allocation2]
  %v12 = vstv %s2
  %13 = vst [vmem:[#allocation4] sm:$0x1] %v12
  %14 = dma.done [#allocation2], 16
  %15 = sfence
  loop: start=0, step=1, limit=5
  $region2: #{tpu_custom_call.1} parent=0 // loop_pre_header
    _
  $region3: #{tpu_custom_call.1} parent=0 // loop_header
    %s17 = sphi 0, %s21
    %p18 = scmp.ge.s32.totalorder %s17, 5
    %s25 = sphi 0, %s25
    %s27 = sphi 0, %s25
    %s28 = sphi 0, %s27
    %s42 = sphi 0, %s28
    %s46 = sphi 0, %s46
    %s48 = sphi 0, %s46
    %s49 = sphi 0, %s48
    %s63 = sphi 0, %s49
    %s69 = sphi 0, %s71
    %s72 = sphi 0, %s69
    %s73 = sphi 0, %s72
    %s89 = sphi 0, %s73
  $region4: #{tpu_custom_call.1} parent=0 // loop_header_branch
    %20 = sbr.rel (%p18) target = $region8
  $region5: #{tpu_custom_call.1} parent=0 // loop_body
    %s22 = ssub.s32 %s17, 1
    %s23 = ssub.s32 %s17, 2
    %s24 = sadd.s32 %s17, 1
    %s26 = sadd.s32 %s25, 1
    %p29 = scmp.eq.s32.totalorder %s17, 2
    %p30 = scmp.ne.s32.totalorder %s25, %s27
    %p31 = scmp.eq.s32.totalorder %s17, 0
    %p32 = por %p30, %p31
    %p33 = scmp.ne.s32.totalorder %s25, %s27
    %p34 = scmp.eq.s32.totalorder %s22, 2
    %p35 = por %p33, %p34
    %p36 = scmp.ne.s32.totalorder %s27, %s28
    %p37 = scmp.eq.s32.totalorder %s22, 0
    %p38 = por %p36, %p37
    %p39 = scmp.ne.s32.totalorder %s27, %s28
    %p40 = scmp.eq.s32.totalorder %s23, 2
    %p41 = por %p39, %p40
    %p43 = scmp.ne.s32.totalorder %s28, %s42
    %p44 = scmp.eq.s32.totalorder %s23, 0
    %p45 = por %p43, %p44
    %s47 = sadd.s32 %s46, 1
    %p50 = scmp.eq.s32.totalorder %s17, 2
    %p51 = scmp.ne.s32.totalorder %s46, %s48
    %p52 = scmp.eq.s32.totalorder %s17, 0
    %p53 = por %p51, %p52
    %p54 = scmp.ne.s32.totalorder %s46, %s48
    %p55 = scmp.eq.s32.totalorder %s22, 2
    %p56 = por %p54, %p55
    %p57 = scmp.ne.s32.totalorder %s48, %s49
    %p58 = scmp.eq.s32.totalorder %s22, 0
    %p59 = por %p57, %p58
    %p60 = scmp.ne.s32.totalorder %s48, %s49
    %p61 = scmp.eq.s32.totalorder %s23, 2
    %p62 = por %p60, %p61
    %p64 = scmp.ne.s32.totalorder %s49, %s63
    %p65 = scmp.eq.s32.totalorder %s23, 0
    %p66 = por %p64, %p65
    %s67 = ssub.s32 %s17, %s24
    %p68 = scmp.eq.s32.totalorder %s67, 0
    %s70 = sadd.s32 %s69, 1
    %s71 = scalar_select %p68, %s69, %s70
    %p74 = pneg %p68
    %p75 = scmp.eq.s32.totalorder %s17, 2
    %p76 = por %p74, %p75
    %p77 = scmp.ne.s32.totalorder %s69, %s72
    %p78 = scmp.eq.s32.totalorder %s17, 0
    %p79 = por %p77, %p78
    %p80 = scmp.ne.s32.totalorder %s69, %s72
    %p81 = scmp.eq.s32.totalorder %s22, 2
    %p82 = por %p80, %p81
    %p83 = scmp.ne.s32.totalorder %s72, %s73
    %p84 = scmp.eq.s32.totalorder %s22, 0
    %p85 = por %p83, %p84
    %p86 = scmp.ne.s32.totalorder %s72, %s73
    %p87 = scmp.eq.s32.totalorder %s23, 2
    %p88 = por %p86, %p87
    %p90 = scmp.ne.s32.totalorder %s73, %s89
    %p91 = scmp.eq.s32.totalorder %s23, 0
    %p92 = por %p90, %p91
    %p93 = scmp.le.s32.totalorder 1, %s17
    %p94 = scmp.lt.s32.totalorder %s17, 4
    %p95 = pnand %p93, %p94
    %p96 = pneg %p95
    // Predicated region
    $region9: #{tpu_custom_call.1} parent=5 // pred_check
      _
    $region10: #{tpu_custom_call.1} parent=5 // pred_check_branch
      %98 = sbr.rel (%p95) target = $region12
    $region11: #{tpu_custom_call.1} parent=5 // pred_region
      %s99 = ssub.s32 %s17, 1
      // Predicated region
      $region13: #{tpu_custom_call.1} parent=11 // pred_check
        %p100 = pneg %p38
      $region14: #{tpu_custom_call.1} parent=11 // pred_check_branch
        %102 = sbr.rel (%p100) target = $region16
      $region15: #{tpu_custom_call.1} parent=11 // pred_region
        _
      $region16: #{tpu_custom_call.1} parent=11 // pred_fallthru
        _
      // Predicated region
      $region17: #{tpu_custom_call.1} parent=11 // pred_check
        %p103 = pneg %p59
      $region18: #{tpu_custom_call.1} parent=11 // pred_check_branch
        %105 = sbr.rel (%p103) target = $region20
      $region19: #{tpu_custom_call.1} parent=11 // pred_region
        _
      $region20: #{tpu_custom_call.1} parent=11 // pred_fallthru
        _
    $region12: #{tpu_custom_call.1} parent=5 // pred_fallthru
      _
    %p106 = scmp.lt.s32.totalorder %s17, 3
    // Predicated region
    $region21: #{tpu_custom_call.1} parent=5 // pred_check
      %p107 = pneg %p106
    $region22: #{tpu_custom_call.1} parent=5 // pred_check_branch
      %109 = sbr.rel (%p107) target = $region24
    $region23: #{tpu_custom_call.1} parent=5 // pred_region
      _
    $region24: #{tpu_custom_call.1} parent=5 // pred_fallthru
      _
    %p110 = scmp.le.s32.totalorder 1, %s17
    %p111 = scmp.lt.s32.totalorder %s17, 4
    %p112 = pnand %p110, %p111
    %p113 = pneg %p112
    // Predicated region
    $region25: #{tpu_custom_call.1} parent=5 // pred_check
      _
    $region26: #{tpu_custom_call.1} parent=5 // pred_check_branch
      %115 = sbr.rel (%p112) target = $region28
    $region27: #{tpu_custom_call.1} parent=5 // pred_region
      %s116 = ssub.s32 %s17, 1
      %p117 = pneg %p38
      %p118 = pneg %p35
      %p119 = pneg %p59
      %p120 = pneg %p56
      %p121 = pneg %p85
      %p122 = pneg %p82
      %p123 = scmp.lt.s32.totalorder %s22, 2
      %s124 = scalar_select %p123, %s22, 2
      %s125 = smul.addr %s124, 8
      %s126 = scalar_lea.vmem %s3, %s125
      %p127 = scmp.lt.s32.totalorder %s22, 2
      %s128 = scalar_select %p127, %s22, 2
      %s129 = smul.addr %s128, 8
      %s130 = scalar_lea.vmem %s3, %s129
      %s131 = smul.u32 %s22, 32
      %v132 = vld [vmem:[#allocation4] sm:$0x1]
      loop: start=0, step=1, limit=8
      $region29: #{tpu_custom_call.1} parent=27 // loop_pre_header
        _
      $region30: #{tpu_custom_call.1} parent=27 // loop_header
        %s134 = sphi 0, %s138
        %p135 = scmp.ge.s32.totalorder %s134, 8
      $region31: #{tpu_custom_call.1} parent=27 // loop_header_branch
        %137 = sbr.rel (%p135) target = $region35
      $region32: #{tpu_custom_call.1} parent=27 // loop_body
        %s139 = smul.u32 %s134, 4
        %s140 = sadd.s32 %s131, %s139
        %s141 = sld [smem:[#allocation3 + %s140]]
        %s142 = scalar_lea.vmem %s1, %s141
        %v143 = vld [vmem:[%s142] sm:$0x1]
        %v144 = vadd.f32 %v132, %v143
        %s145 = sadd.s32 %s140, 1
        %s146 = sld [smem:[#allocation3 + %s145]]
        %s147 = scalar_lea.vmem %s1, %s146
        %v148 = vld [vmem:[%s147] sm:$0x1]
        %v149 = vadd.f32 %v144, %v148
        %s150 = sadd.s32 %s140, 2
        %s151 = sld [smem:[#allocation3 + %s150]]
        %s152 = scalar_lea.vmem %s1, %s151
        %v153 = vld [vmem:[%s152] sm:$0x1]
        %v154 = vadd.f32 %v149, %v153
        %s155 = sadd.s32 %s140, 3
        %s156 = sld [smem:[#allocation3 + %s155]]
        %s157 = scalar_lea.vmem %s1, %s156
        %v158 = vld [vmem:[%s157] sm:$0x1]
        %v159 = vadd.f32 %v154, %v158
        %s160 = scalar_lea.vmem %s130, %s134
        %vm161 = vcmask 0
        %162 = vst.msk [vmem:[%s160] sm:$0x1] %vm161, %v159
      $region33: #{tpu_custom_call.1} parent=27 // loop_footer
        %s138 = sadd.s32 1, %s134
      $region34: #{tpu_custom_call.1} parent=27 // loop_footer_branch
        %133 = sbr.rel target = $region30
      $region35: #{tpu_custom_call.1} parent=27 // loop_exit
        _
      %p163 = scmp.lt.s32.totalorder %s22, 2
      %s164 = scalar_select %p163, %s22, 2
      %s165 = smul.addr %s164, 8
      %s166 = scalar_lea.vmem %s3, %s165
      // Predicated region
      $region36: #{tpu_custom_call.1} parent=27 // pred_check
        %p167 = pneg %p82
      $region37: #{tpu_custom_call.1} parent=27 // pred_check_branch
        %169 = sbr.rel (%p167) target = $region39
      $region38: #{tpu_custom_call.1} parent=27 // pred_region
        _
      $region39: #{tpu_custom_call.1} parent=27 // pred_fallthru
        _
    $region28: #{tpu_custom_call.1} parent=5 // pred_fallthru
      _
    %p170 = scmp.le.s32.totalorder 2, %s17
    // Predicated region
    $region40: #{tpu_custom_call.1} parent=5 // pred_check
      %p171 = pneg %p170
    $region41: #{tpu_custom_call.1} parent=5 // pred_check_branch
      %173 = sbr.rel (%p171) target = $region43
    $region42: #{tpu_custom_call.1} parent=5 // pred_region
      %s174 = ssub.s32 %s17, 2
      // Predicated region
      $region44: #{tpu_custom_call.1} parent=42 // pred_check
        %p175 = pneg %p88
      $region45: #{tpu_custom_call.1} parent=42 // pred_check_branch
        %177 = sbr.rel (%p175) target = $region47
      $region46: #{tpu_custom_call.1} parent=42 // pred_region
        %p178 = scmp.lt.s32.totalorder %s23, 2
        %s179 = scalar_select %p178, %s23, 2
        %s180 = smul.addr %s179, 8
        %s181 = scalar_lea.vmem %s3, %s180
      $region47: #{tpu_custom_call.1} parent=42 // pred_fallthru
        _
    $region43: #{tpu_custom_call.1} parent=5 // pred_fallthru
      _
  $region6: #{tpu_custom_call.1} parent=0 // loop_footer
    %s21 = sadd.s32 1, %s17
  $region7: #{tpu_custom_call.1} parent=0 // loop_footer_branch
    %16 = sbr.rel target = $region3
  $region8: #{tpu_custom_call.1} parent=0 // loop_exit
    _

</llo_original>
